<compile_context>
chip_gen: v6e
topology: v6e:2x2x1
jax: 0.10.0
libtpu: 0.0.40
codegen_flags: <defaults>
</compile_context>

<pallas_src>
import functools

import jax
import jax.numpy as jnp
from jax.experimental import pallas as pl
from jax.experimental.pallas import tpu as pltpu

# ---------------------------------------------------------------------------
# Tunables
# ---------------------------------------------------------------------------
_NC = 2              # leading "parallel" grid axis (v7x dual-TC; no-op on v5e/v6e)
_CE_TL_MAX = 16384   # CE pixels per block on the lane axis (~C*64 KiB logits/buffer)
_L1_TR_MAX = 2048    # depth-L1 rows (of 128 lanes) per block (1 MiB/input/buffer)
_LANE = 128
_SENTINEL = 1e38     # gt value meaning "masked out" (mask folded into gt stream)
_SENTINEL_THRESH = 1e30


# ---------------------------------------------------------------------------
# Glue: F.interpolate(..., mode='nearest') semantics for NCHW
# ---------------------------------------------------------------------------
def interpolate_nearest(x, out_hw):
    n, c, h, w = x.shape
    H, W = out_hw
    if (h, w) == (H, W):
        return x
    if H % h == 0 and W % w == 0:
        # integer upsample factor -> pure broadcast/repeat (no gather)
        fh, fw = H // h, W // w
        y = jnp.broadcast_to(x[:, :, :, None, :, None], (n, c, h, fh, w, fw))
        return y.reshape(n, c, H, W)
    # general case: src = floor(dst * in / out), exact integer arithmetic
    hi = jnp.minimum((jnp.arange(H) * h) // H, h - 1).astype(jnp.int32)
    wi = jnp.minimum((jnp.arange(W) * w) // W, w - 1).astype(jnp.int32)
    return x[:, :, hi[:, None], wi[None, :]]


# ---------------------------------------------------------------------------
# Kernel 1: cross-entropy over pixels (segment_semantic), lane-dense layout
#   logits: (C, P) f32 (class-major), labels: (1, P) int32
# ---------------------------------------------------------------------------
def _seg_ce_kernel(logits_ref, labels_ref, out_ref, *, tl, spc, total):
    c = pl.program_id(0)   # core split ("parallel")
    i = pl.program_id(1)   # reduction steps ("arbitrary")

    @pl.when(i == 0)
    def _():
        out_ref[...] = jnp.zeros_like(out_ref)

    x = logits_ref[...].astype(jnp.float32)          # (C, tl)
    lab = labels_ref[...]                            # (1, tl) int32

    blk = c * spc + i                                # unclamped global block id
    col = jax.lax.broadcasted_iota(jnp.int32, (1, tl), 1) + blk * tl
    valid = col < total                              # masks ragged tail + dup blocks

    # logsumexp over the (tiny) class axis -> full-lane VPU/EUP work
    m = jnp.max(x, axis=0, keepdims=True)                                  # (1, tl)
    lse = m + jnp.log(jnp.sum(jnp.exp(x - m), axis=0, keepdims=True))      # (1, tl)

    # true-class logit via C compare+selects (no gather)
    cls = jax.lax.broadcasted_iota(jnp.int32, x.shape, 0)                  # (C, tl)
    true_logit = jnp.sum(jnp.where(cls == lab, x, 0.0), axis=0, keepdims=True)

    # elementwise accumulation into the resident lane-dense output block
    out_ref[...] += jnp.where(valid, lse - true_logit, 0.0)


def seg_cross_entropy(logits_cm, labels_row):
    """logits_cm: (C, P) f32 class-major, labels_row: (1, P) int32 -> mean CE."""
    C, P = logits_cm.shape
    tl = _CE_TL_MAX if P >= _CE_TL_MAX else P
    nblk = pl.cdiv(P, tl)
    spc = pl.cdiv(nblk, _NC)          # blocks per core

    def in_map(c, i):
        # clamp so no fully out-of-range DMA; duplicates are masked in-kernel
        return (0, jnp.minimum(c * spc + i, nblk - 1))

    kernel = functools.partial(_seg_ce_kernel, tl=tl, spc=spc, total=P)
    out = pl.pallas_call(
        kernel,
        out_shape=jax.ShapeDtypeStruct((_NC, 1, tl), jnp.float32),
        grid_spec=pltpu.PrefetchScalarGridSpec(
            num_scalar_prefetch=0,
            grid=(_NC, spc),
            in_specs=[
                pl.BlockSpec((C, tl), in_map),      # class-major logits
                pl.BlockSpec((1, tl), in_map),      # labels
            ],
            out_specs=pl.BlockSpec((None, 1, tl), lambda c, i: (c, 0, 0)),
        ),
        compiler_params=pltpu.CompilerParams(
            dimension_semantics=("parallel", "arbitrary")),
    )(logits_cm, labels_row)
    return jnp.sum(out) / P           # nn.CrossEntropyLoss(reduction='mean')


# ---------------------------------------------------------------------------
# Kernel 2: masked L1 (depth_zbuffer); mask folded into gt via sentinel value
#   pred, gt_masked: (R, 128) f32
# ---------------------------------------------------------------------------
def _depth_l1_kernel(p_ref, g_ref, num_ref, den_ref, *, tr, spc, rows_total):
    c = pl.program_id(0)
    i = pl.program_id(1)

    @pl.when(i == 0)
    def _():
        num_ref[...] = jnp.zeros_like(num_ref)
        den_ref[...] = jnp.zeros_like(den_ref)

    p = p_ref[...]                                   # (tr, 128)
    g = g_ref[...]                                   # (tr, 128), sentinel = masked out

    blk = c * spc + i
    row = jax.lax.broadcasted_iota(jnp.int32, p.shape, 0) + blk * tr
    ok = (row < rows_total) & (g < _SENTINEL_THRESH)

    # sublane-axis reductions only (cheap VPU adds); lane reduce deferred to wrapper
    num_ref[...] += jnp.sum(jnp.where(ok, jnp.abs(p - g), 0.0),
                            axis=0, keepdims=True)
    den_ref[...] += jnp.sum(ok.astype(jnp.float32), axis=0, keepdims=True)


def masked_l1_mean(pred_flat, gt_masked_flat):
    """sum(|pred-gt|) / count over pixels where gt != sentinel (== masked L1Loss)."""
    P = pred_flat.shape[0]
    if P % _LANE != 0:
        # TODO(synk): rare ragged case (pixel count not multiple of 128): minimal
        # (<128 elem) pad; padded gt elems carry the sentinel so they are excluded.
        pad = _LANE - P % _LANE
        pred_flat = jnp.pad(pred_flat, (0, pad))
        gt_masked_flat = jnp.pad(gt_masked_flat, (0, pad), constant_values=_SENTINEL)
    R = pred_flat.shape[0] // _LANE
    p2 = pred_flat.reshape(R, _LANE)
    g2 = gt_masked_flat.reshape(R, _LANE)

    tr = _L1_TR_MAX if R >= _L1_TR_MAX else R
    nblk = pl.cdiv(R, tr)
    spc = pl.cdiv(nblk, _NC)

    def in_map(c, i):
        return (jnp.minimum(c * spc + i, nblk - 1), 0)

    kernel = functools.partial(_depth_l1_kernel, tr=tr, spc=spc, rows_total=R)
    num, den = pl.pallas_call(
        kernel,
        out_shape=(
            jax.ShapeDtypeStruct((_NC, 1, _LANE), jnp.float32),
            jax.ShapeDtypeStruct((_NC, 1, _LANE), jnp.float32),
        ),
        grid_spec=pltpu.PrefetchScalarGridSpec(
            num_scalar_prefetch=0,
            grid=(_NC, spc),
            in_specs=[
                pl.BlockSpec((tr, _LANE), in_map),
                pl.BlockSpec((tr, _LANE), in_map),
            ],
            out_specs=(
                pl.BlockSpec((None, 1, _LANE), lambda c, i: (c, 0, 0)),
                pl.BlockSpec((None, 1, _LANE), lambda c, i: (c, 0, 0)),
            ),
        ),
        compiler_params=pltpu.CompilerParams(
            dimension_semantics=("parallel", "arbitrary")),
    )(p2, g2)
    # TODO(synk): all-zero mask gives NaN here, same as PyTorch masked_select+L1Loss.
    return jnp.sum(num) / jnp.sum(den)


# ---------------------------------------------------------------------------
# DataCriterions (JAX/Pallas port of the PyTorch module)
# ---------------------------------------------------------------------------
class DataCriterions:
    def __init__(self, task, num_seg_cls=5):
        if task not in ["segment_semantic", "depth_zbuffer"]:
            raise ValueError("Wrong task name! Choose segment_semantic or depth_zbuffer.")
        self.task = task
        # TODO(synk): self.cross_entropy / self.num_seg_cls come from a subclass in the
        # original code; assume nn.CrossEntropyLoss(reduction='mean') and a ctor arg.
        self.num_seg_cls = num_seg_cls

    def seg_loss(self, pred, gt):
        # pred: (N, C, H, W) logits; gt: (N, 1, h, w) float class ids
        N, C, H, W = pred.shape
        # class-major, lane-dense layout: (C, N*H*W); pixel order (n, h, w)
        logits_cm = jnp.transpose(pred, (1, 0, 2, 3)).reshape(self.num_seg_cls, -1)
        gt_i = interpolate_nearest(gt.astype(jnp.float32), (H, W))
        labels = gt_i.astype(jnp.int32).reshape(1, -1)        # same (n, h, w) order
        return seg_cross_entropy(logits_cm.astype(jnp.float32), labels)

    def depth_loss(self, pred, gt, mask=None):
        # pred: (N, 1, H, W); gt/mask: (N, 1, h, w)
        N, C, H, W = pred.shape
        gt_i = interpolate_nearest(gt.astype(jnp.float32), (H, W))
        if mask is not None:
            gm = interpolate_nearest(mask.astype(jnp.float32), (H, W))
            binary_mask = (gt_i != 255.0) & (gm.astype(jnp.int32) == 1)
        else:
            binary_mask = jnp.broadcast_to(
                jnp.sum(gt_i, axis=1, keepdims=True) > 3 * 1e-05, gt_i.shape)
        # fold the mask into the gt stream (drops a whole HBM input stream)
        gt_masked = jnp.where(binary_mask, gt_i, jnp.float32(_SENTINEL))
        return masked_l1_mean(pred.reshape(-1).astype(jnp.float32),
                              gt_masked.reshape(-1))

    def forward(self, pred, gt, mask=None):
        if self.task == "segment_semantic":
            return self.seg_loss(pred, gt)
        elif self.task == "depth_zbuffer":
            return self.depth_loss(pred, gt, mask)

    __call__ = forward


if __name__ == "__main__":
    key = jax.random.PRNGKey(0)
    k1, k2, k3, k4, k5 = jax.random.split(key, 5)

    # ---- segment_semantic: pred (2, 5, 16, 16) logits, gt (2, 1, 8, 8) class ids ----
    num_cls = 5
    seg_pred = jax.random.normal(k1, (2, num_cls, 16, 16), dtype=jnp.float32)
    seg_gt = jax.random.randint(k2, (2, 1, 8, 8), 0, num_cls).astype(jnp.float32)
    seg_crit = DataCriterions("segment_semantic", num_seg_cls=num_cls)
    seg_loss = jax.block_until_ready(jax.jit(seg_crit)(seg_pred, seg_gt))

    # reference check (plain JAX)
    ref_logits = jnp.transpose(seg_pred, (0, 2, 3, 1)).reshape(-1, num_cls)
    ref_lab = jnp.transpose(
        interpolate_nearest(seg_gt, (16, 16)), (0, 2, 3, 1)
    ).reshape(-1).astype(jnp.int32)
    ref_ce = jnp.mean(
        jax.nn.logsumexp(ref_logits, axis=-1)
        - jnp.take_along_axis(ref_logits, ref_lab[:, None], axis=-1)[:, 0]
    )
    assert jnp.allclose(seg_loss, ref_ce, rtol=1e-5, atol=1e-5), (seg_loss, ref_ce)

    # ---- depth_zbuffer: pred (2, 1, 16, 16), gt (2, 1, 8, 8), mask (2, 1, 8, 8) ----
    d_pred = jax.random.normal(k3, (2, 1, 16, 16), dtype=jnp.float32)
    d_gt = jax.random.uniform(k4, (2, 1, 8, 8), minval=0.0, maxval=10.0)
    d_mask = (jax.random.uniform(k5, (2, 1, 8, 8)) > 0.3).astype(jnp.float32)
    depth_crit = DataCriterions("depth_zbuffer")
    depth_loss = jax.block_until_ready(jax.jit(depth_crit)(d_pred, d_gt, d_mask))

    # reference check (plain JAX)
    gt_i = interpolate_nearest(d_gt, (16, 16))
    gm_i = interpolate_nearest(d_mask, (16, 16))
    bm = ((gt_i != 255.0) & (gm_i.astype(jnp.int32) == 1)).astype(jnp.float32)
    ref_l1 = jnp.sum(jnp.abs(d_pred - gt_i) * bm) / jnp.sum(bm)
    assert jnp.allclose(depth_loss, ref_l1, rtol=1e-5, atol=1e-5), (depth_loss, ref_l1)

    print("KERNEL_OK")
</pallas_src>

<mosaic_0001>
module attributes {stable_mosaic.version = 11 : i64} {
  func.func @_seg_ce_kernel(%arg0: i32, %arg1: i32, %arg2: memref<5x512xf32, #tpu.memory_space<vmem>>, %arg3: memref<1x512xi32, #tpu.memory_space<vmem>>, %arg4: memref<1x1x512xf32, #tpu.memory_space<vmem>>) attributes {dimension_semantics = [#tpu.dimension_semantics<parallel>, #tpu.dimension_semantics<arbitrary>], iteration_bounds = array<i64: 2, 1>, scalar_prefetch = 0 : i64, scratch_operands = 0 : i64, tpu.core_type = #tpu.core_type<tc>, window_params = [{transform_indices = @transform_0, window_bounds = array<i64: 5, 512>}, {transform_indices = @transform_1, window_bounds = array<i64: 1, 512>}, {transform_indices = @transform_2, window_bounds = array<i64: 1, 1, 512>}]} {
    %c0_i32 = arith.constant 0 : i32
    %0 = arith.cmpi eq, %arg1, %c0_i32 : i32
    %1 = arith.extui %0 : i1 to i32
    %c0_i32_0 = arith.constant 0 : i32
    %2 = arith.cmpi ne, %1, %c0_i32_0 : i32
    scf.if %2 {
      %cst_15 = arith.constant 0.000000e+00 : f32
      %38 = vector.broadcast %cst_15 : f32 to vector<1x512xf32>
      %c0_16 = arith.constant 0 : index
      %c0_17 = arith.constant 0 : index
      %c0_18 = arith.constant 0 : index
      %39 = vector.load %arg4[%c0_16, %c0_17, %c0_18] : memref<1x1x512xf32, #tpu.memory_space<vmem>>, vector<1x1x512xf32>
      %40 = vector.shape_cast %39 : vector<1x1x512xf32> to vector<1x512xf32>
      %41 = vector.shape_cast %38 : vector<1x512xf32> to vector<1x1x512xf32>
      tpu.vector_store %arg4[%c0_16, %c0_17, %c0_18], %41 {strides = array<i32>} : memref<1x1x512xf32, #tpu.memory_space<vmem>>, vector<1x1x512xf32>,
    } else {
    }
    %c0 = arith.constant 0 : index
    %c0_1 = arith.constant 0 : index
    %3 = vector.load %arg2[%c0, %c0_1] : memref<5x512xf32, #tpu.memory_space<vmem>>, vector<5x512xf32>
    %c0_2 = arith.constant 0 : index
    %c0_3 = arith.constant 0 : index
    %4 = vector.load %arg3[%c0_2, %c0_3] : memref<1x512xi32, #tpu.memory_space<vmem>>, vector<1x512xi32>
    %c1_i32 = arith.constant 1 : i32
    %5 = arith.muli %arg0, %c1_i32 : i32
    %6 = arith.addi %5, %arg1 : i32
    %7 = tpu.iota {dimensions = array<i32: 1>} : vector<1x512xi32>
    %c512_i32 = arith.constant 512 : i32
    %8 = arith.muli %6, %c512_i32 : i32
    %9 = vector.broadcast %8 : i32 to vector<1x512xi32>
    %10 = arith.addi %7, %9 : vector<1x512xi32>
    %c512_i32_4 = arith.constant 512 : i32
    %11 = vector.broadcast %c512_i32_4 : i32 to vector<1x512xi32>
    %12 = arith.cmpi slt, %10, %11 : vector<1x512xi32>
    %cst = arith.constant dense<0xFF800000> : vector<512xf32>
    %13 = vector.multi_reduction <maximumf>, %3, %cst [0] : vector<5x512xf32> to vector<512xf32>
    %14 = vector.shape_cast %13 : vector<512xf32> to vector<1x512xf32>
    %15 = vector.broadcast %14 : vector<1x512xf32> to vector<5x512xf32>
    %16 = arith.subf %3, %15 : vector<5x512xf32>
    %17 = math.exp %16 : vector<5x512xf32>
    %cst_5 = arith.constant dense<0.000000e+00> : vector<512xf32>
    %18 = vector.multi_reduction <add>, %17, %cst_5 [0] : vector<5x512xf32> to vector<512xf32>
    %19 = vector.shape_cast %18 : vector<512xf32> to vector<1x512xf32>
    %20 = math.log %19 : vector<1x512xf32>
    %21 = arith.addf %14, %20 : vector<1x512xf32>
    %22 = tpu.iota {dimensions = array<i32: 0>} : vector<5x512xi32>
    %23 = vector.broadcast %4 : vector<1x512xi32> to vector<5x512xi32>
    %24 = arith.cmpi eq, %22, %23 : vector<5x512xi32>
    %cst_6 = arith.constant 0.000000e+00 : f32
    %25 = vector.broadcast %cst_6 : f32 to vector<5x512xf32>
    %26 = arith.select %24, %3, %25 : vector<5x512xi1>, vector<5x512xf32>
    %cst_7 = arith.constant dense<0.000000e+00> : vector<512xf32>
    %27 = vector.multi_reduction <add>, %26, %cst_7 [0] : vector<5x512xf32> to vector<512xf32>
    %28 = vector.shape_cast %27 : vector<512xf32> to vector<1x512xf32>
    %c0_8 = arith.constant 0 : index
    %c0_9 = arith.constant 0 : index
    %c0_10 = arith.constant 0 : index
    %29 = vector.load %arg4[%c0_8, %c0_9, %c0_10] : memref<1x1x512xf32, #tpu.memory_space<vmem>>, vector<1x1x512xf32>
    %30 = vector.shape_cast %29 : vector<1x1x512xf32> to vector<1x512xf32>
    %31 = arith.subf %21, %28 : vector<1x512xf32>
    %cst_11 = arith.constant 0.000000e+00 : f32
    %32 = vector.broadcast %cst_11 : f32 to vector<1x512xf32>
    %33 = arith.select %12, %31, %32 : vector<1x512xi1>, vector<1x512xf32>
    %34 = arith.addf %30, %33 : vector<1x512xf32>
    %c0_12 = arith.constant 0 : index
    %c0_13 = arith.constant 0 : index
    %c0_14 = arith.constant 0 : index
    %35 = vector.load %arg4[%c0_12, %c0_13, %c0_14] : memref<1x1x512xf32, #tpu.memory_space<vmem>>, vector<1x1x512xf32>
    %36 = vector.shape_cast %35 : vector<1x1x512xf32> to vector<1x512xf32>
    %37 = vector.shape_cast %34 : vector<1x512xf32> to vector<1x1x512xf32>
    tpu.vector_store %arg4[%c0_12, %c0_13, %c0_14], %37 {strides = array<i32>} : memref<1x1x512xf32, #tpu.memory_space<vmem>>, vector<1x1x512xf32>,
    return
  }
  func.func @transform_0(%arg0: i32, %arg1: i32) -> (i32, i32) {
    %c1_i32 = arith.constant 1 : i32
    %0 = arith.muli %arg0, %c1_i32 : i32
    %1 = arith.addi %0, %arg1 : i32
    %c0_i32 = arith.constant 0 : i32
    %2 = arith.minsi %1, %c0_i32 : i32
    %c0_i32_0 = arith.constant 0 : i32
    %c0_i32_1 = arith.constant 0 : i32
    return %c0_i32_0, %2 : i32, i32
  }
  func.func @transform_1(%arg0: i32, %arg1: i32) -> (i32, i32) {
    %c1_i32 = arith.constant 1 : i32
    %0 = arith.muli %arg0, %c1_i32 : i32
    %1 = arith.addi %0, %arg1 : i32
    %c0_i32 = arith.constant 0 : i32
    %2 = arith.minsi %1, %c0_i32 : i32
    %c0_i32_0 = arith.constant 0 : i32
    %c0_i32_1 = arith.constant 0 : i32
    return %c0_i32_0, %2 : i32, i32
  }
  func.func @transform_2(%arg0: i32, %arg1: i32) -> (i32, i32, i32) {
    %c0_i32 = arith.constant 0 : i32
    %c0_i32_0 = arith.constant 0 : i32
    %c0_i32_1 = arith.constant 0 : i32
    return %arg0, %c0_i32, %c0_i32_0 : i32, i32, i32
  }
}

</mosaic_0001>

<llo_original>
// kernel: _unnamed_function_.1
$region0: #{_unnamed_function_.1}
  #allocation0 [shape = 'u32[]', space=smem, size = 0x4, offset = 0x4, fixed_abs, tag = 'smem constant byte address 0x4 - core index']
  #allocation1 [shape = 'u32[144,128]{1,0:T(1,128)}', space=vmem, size = 0x12000, scoped, tag = 'internal scratch']
  %s0 = inlined_call_operand.vmem [shape: f32[5,512], index: 0, kind: input, shape index: {}]
  %s1 = inlined_call_operand.vmem [shape: s32[1,512], index: 1, kind: input, shape index: {}]
  %s2 = inlined_call_operand.vmem [shape: f32[2,1,512], index: 2, kind: output, shape index: {}]
  %s3 = sld [smem:[#allocation0]]
  $region45: #{_unnamed_function_.1} parent=0
    _
  %s5 = ssub.s32 1, %s3
  %s6 = scalar_select 0, %s5, %s3
  loop: start=0, step=1, limit=4
  $region2: #{_unnamed_function_.1} parent=0 // loop_pre_header
    _
  $region3: #{_unnamed_function_.1} parent=0 // loop_header
    %s8 = sphi 0, %s12
    %p9 = scmp.ge.s32.totalorder %s8, 4
    %s15 = sphi 0, %s27
    %s16 = sphi 0, %s23
    %s17 = sphi 0, %s15
    %s18 = sphi 0, %s16
    %s19 = sphi 0, %s17
    %s20 = sphi 0, %s18
    %s36 = sphi 0, %s38
    %s39 = sphi 0, %s36
    %s40 = sphi 0, %s39
    %s56 = sphi 0, %s40
    %s68 = sphi 0, %s70
    %s71 = sphi 0, %s68
    %s72 = sphi 0, %s71
    %s88 = sphi 0, %s72
    %s94 = sphi 0, %s96
    %s97 = sphi 0, %s94
    %s98 = sphi 0, %s97
    %s114 = sphi 0, %s98
  $region4: #{_unnamed_function_.1} parent=0 // loop_header_branch
    %11 = sbr.rel (%p9) target = $region8
  $region5: #{_unnamed_function_.1} parent=0 // loop_body
    %s13 = ssub.s32 %s8, 1
    %s14 = ssub.s32 %s8, 2
    %s21 = sadd.s32 1, %s16
    %p22 = scmp.ge.s32.totalorder %s21, 1
    %s23 = scalar_select %p22, 0, %s21
    %s24 = sadd.s32 1, %s15
    %s25 = scalar_select %p22, %s24, %s15
    %p26 = scmp.ge.s32.totalorder %s25, 2
    %s27 = scalar_select %p26, 0, %s25
    %s28 = sadd.s32 %s15, %s16
    %p29 = scmp.lt.s32.totalorder %s28, 0
    %s30 = scalar_select %p29, %s28, 0
    %s31 = sadd.s32 %s27, %s23
    %p32 = scmp.lt.s32.totalorder %s31, 0
    %s33 = scalar_select %p32, %s31, 0
    %s34 = ssub.s32 %s30, %s33
    %p35 = scmp.eq.s32.totalorder %s34, 0
    %s37 = sadd.s32 %s36, 1
    %s38 = scalar_select %p35, %s36, %s37
    %p41 = pneg %p35
    %p42 = scmp.eq.s32.totalorder %s8, 1
    %p43 = por %p41, %p42
    %p44 = scmp.ne.s32.totalorder %s36, %s39
    %p45 = scmp.eq.s32.totalorder %s8, 0
    %p46 = por %p44, %p45
    %p47 = scmp.ne.s32.totalorder %s36, %s39
    %p48 = scmp.eq.s32.totalorder %s13, 1
    %p49 = por %p47, %p48
    %p50 = scmp.ne.s32.totalorder %s39, %s40
    %p51 = scmp.eq.s32.totalorder %s13, 0
    %p52 = por %p50, %p51
    %p53 = scmp.ne.s32.totalorder %s39, %s40
    %p54 = scmp.eq.s32.totalorder %s14, 1
    %p55 = por %p53, %p54
    %p57 = scmp.ne.s32.totalorder %s40, %s56
    %p58 = scmp.eq.s32.totalorder %s14, 0
    %p59 = por %p57, %p58
    %s60 = sadd.s32 %s15, %s16
    %p61 = scmp.lt.s32.totalorder %s60, 0
    %s62 = scalar_select %p61, %s60, 0
    %s63 = sadd.s32 %s27, %s23
    %p64 = scmp.lt.s32.totalorder %s63, 0
    %s65 = scalar_select %p64, %s63, 0
    %s66 = ssub.s32 %s62, %s65
    %p67 = scmp.eq.s32.totalorder %s66, 0
    %s69 = sadd.s32 %s68, 1
    %s70 = scalar_select %p67, %s68, %s69
    %p73 = pneg %p67
    %p74 = scmp.eq.s32.totalorder %s8, 1
    %p75 = por %p73, %p74
    %p76 = scmp.ne.s32.totalorder %s68, %s71
    %p77 = scmp.eq.s32.totalorder %s8, 0
    %p78 = por %p76, %p77
    %p79 = scmp.ne.s32.totalorder %s68, %s71
    %p80 = scmp.eq.s32.totalorder %s13, 1
    %p81 = por %p79, %p80
    %p82 = scmp.ne.s32.totalorder %s71, %s72
    %p83 = scmp.eq.s32.totalorder %s13, 0
    %p84 = por %p82, %p83
    %p85 = scmp.ne.s32.totalorder %s71, %s72
    %p86 = scmp.eq.s32.totalorder %s14, 1
    %p87 = por %p85, %p86
    %p89 = scmp.ne.s32.totalorder %s72, %s88
    %p90 = scmp.eq.s32.totalorder %s14, 0
    %p91 = por %p89, %p90
    %s92 = ssub.s32 %s15, %s27
    %p93 = scmp.eq.s32.totalorder %s92, 0
    %s95 = sadd.s32 %s94, 1
    %s96 = scalar_select %p93, %s94, %s95
    %p99 = pneg %p93
    %p100 = scmp.eq.s32.totalorder %s8, 1
    %p101 = por %p99, %p100
    %p102 = scmp.ne.s32.totalorder %s94, %s97
    %p103 = scmp.eq.s32.totalorder %s8, 0
    %p104 = por %p102, %p103
    %p105 = scmp.ne.s32.totalorder %s94, %s97
    %p106 = scmp.eq.s32.totalorder %s13, 1
    %p107 = por %p105, %p106
    %p108 = scmp.ne.s32.totalorder %s97, %s98
    %p109 = scmp.eq.s32.totalorder %s13, 0
    %p110 = por %p108, %p109
    %p111 = scmp.ne.s32.totalorder %s97, %s98
    %p112 = scmp.eq.s32.totalorder %s14, 1
    %p113 = por %p111, %p112
    %p115 = scmp.ne.s32.totalorder %s98, %s114
    %p116 = scmp.eq.s32.totalorder %s14, 0
    %p117 = por %p115, %p116
    %p118 = scmp.le.s32.totalorder 1, %s8
    %p119 = scmp.lt.s32.totalorder %s8, 3
    %p120 = pnand %p118, %p119
    %p121 = pneg %p120
    // Predicated region
    $region9: #{_unnamed_function_.1} parent=5 // pred_check
      _
    $region10: #{_unnamed_function_.1} parent=5 // pred_check_branch
      %123 = sbr.rel (%p120) target = $region12
    $region11: #{_unnamed_function_.1} parent=5 // pred_region
      %s124 = ssub.s32 %s8, 1
    $region12: #{_unnamed_function_.1} parent=5 // pred_fallthru
      _
    %p125 = scmp.lt.s32.totalorder %s8, 2
    // Predicated region
    $region13: #{_unnamed_function_.1} parent=5 // pred_check
      %p126 = pneg %p125
    $region14: #{_unnamed_function_.1} parent=5 // pred_check_branch
      %128 = sbr.rel (%p126) target = $region16
    $region15: #{_unnamed_function_.1} parent=5 // pred_region
      // Predicated region
      $region17: #{_unnamed_function_.1} parent=15 // pred_check
        %p129 = pneg %p46
      $region18: #{_unnamed_function_.1} parent=15 // pred_check_branch
        %131 = sbr.rel (%p129) target = $region20
      $region19: #{_unnamed_function_.1} parent=15 // pred_region
        %s132 = sadd.s32 %s15, %s16
        %p133 = scmp.lt.s32.totalorder %s132, 0
        %s134 = scalar_select %p133, %s132, 0
        %s135 = smul.u32 4, %s134
        %p136 = scmp.lt.s32.totalorder %s135, 3
        %s137 = scalar_select %p136, %s135, 3
        %s138 = smul.addr %s137, 8
        %s139 = scalar_lea.vmem %s0, %s138
        %s140 = sadd.s32 %s15, %s16
        %p141 = scmp.lt.s32.totalorder %s140, 0
        %s142 = scalar_select %p141, %s140, 0
        %s143 = smul.u32 4, %s142
      $region20: #{_unnamed_function_.1} parent=15 // pred_fallthru
        _
      // Predicated region
      $region21: #{_unnamed_function_.1} parent=15 // pred_check
        %p144 = pneg %p78
      $region22: #{_unnamed_function_.1} parent=15 // pred_check_branch
        %146 = sbr.rel (%p144) target = $region24
      $region23: #{_unnamed_function_.1} parent=15 // pred_region
        %s147 = sadd.s32 %s15, %s16
        %p148 = scmp.lt.s32.totalorder %s147, 0
        %s149 = scalar_select %p148, %s147, 0
        %s150 = smul.u32 4, %s149
        %p151 = scmp.lt.s32.totalorder %s150, 3
        %s152 = scalar_select %p151, %s150, 3
        %s153 = scalar_lea.vmem %s1, %s152
        %s154 = sadd.s32 %s15, %s16
        %p155 = scmp.lt.s32.totalorder %s154, 0
        %s156 = scalar_select %p155, %s154, 0
        %s157 = smul.u32 4, %s156
      $region24: #{_unnamed_function_.1} parent=15 // pred_fallthru
        _
    $region16: #{_unnamed_function_.1} parent=5 // pred_fallthru
      _
    %p158 = scmp.le.s32.totalorder 1, %s8
    %p159 = scmp.lt.s32.totalorder %s8, 3
    %p160 = pnand %p158, %p159
    %p161 = pneg %p160
    // Predicated region
    $region25: #{_unnamed_function_.1} parent=5 // pred_check
      _
    $region26: #{_unnamed_function_.1} parent=5 // pred_check_branch
      %163 = sbr.rel (%p160) target = $region28
    $region27: #{_unnamed_function_.1} parent=5 // pred_region
      %s164 = ssub.s32 %s8, 1
      %s165 = sadd.s32 %s17, %s18
      %p166 = scmp.lt.s32.totalorder %s165, 0
      %s167 = scalar_select %p166, %s165, 0
      %s168 = smul.u32 4, %s167
      %p169 = scmp.lt.s32.totalorder %s168, 3
      %s170 = scalar_select %p169, %s168, 3
      %s171 = smul.addr %s170, 8
      %s172 = scalar_lea.vmem %s0, %s171
      %p173 = pneg %p52
      %p174 = pneg %p49
      %s175 = sadd.s32 %s17, %s18
      %p176 = scmp.lt.s32.totalorder %s175, 0
      %s177 = scalar_select %p176, %s175, 0
      %s178 = smul.u32 4, %s177
      %p179 = scmp.lt.s32.totalorder %s178, 3
      %s180 = scalar_select %p179, %s178, 3
      %s181 = scalar_lea.vmem %s1, %s180
      %p182 = pneg %p84
      %p183 = pneg %p81
      %p184 = pneg %p110
      %p185 = pneg %p107
      %p186 = scmp.lt.s32.totalorder %s17, 1
      %s187 = scalar_select %p186, %s17, 1
      %s188 = smul.addr %s187, 4
      %s189 = scalar_lea.vmem %s2, %s188
      %s190 = sadd.s32 %s17, %s18
      %p191 = scmp.lt.s32.totalorder %s190, 0
      %s192 = scalar_select %p191, %s190, 0
      %s193 = smul.u32 4, %s192
      %p194 = scmp.lt.s32.totalorder %s193, 3
      %s195 = scalar_select %p194, %s193, 3
      %s196 = smul.addr %s195, 8
      %s197 = scalar_lea.vmem %s0, %s196
      %s198 = sadd.s32 %s17, %s18
      %p199 = scmp.lt.s32.totalorder %s198, 0
      %s200 = scalar_select %p199, %s198, 0
      %s201 = smul.u32 4, %s200
      %s202 = sadd.s32 %s17, %s18
      %p203 = scmp.lt.s32.totalorder %s202, 0
      %s204 = scalar_select %p203, %s202, 0
      %s205 = smul.u32 4, %s204
      %p206 = scmp.lt.s32.totalorder %s205, 3
      %s207 = scalar_select %p206, %s205, 3
      %s208 = scalar_lea.vmem %s1, %s207
      %s209 = sadd.s32 %s17, %s18
      %p210 = scmp.lt.s32.totalorder %s209, 0
      %s211 = scalar_select %p210, %s209, 0
      %s212 = smul.u32 4, %s211
      %p213 = scmp.lt.s32.totalorder %s17, 1
      %s214 = scalar_select %p213, %s17, 1
      %s215 = smul.addr %s214, 4
      %s216 = scalar_lea.vmem %s2, %s215
      %p217 = scmp.eq.s32.totalorder %s18, 0
      // Predicated region
      $region29: #{_unnamed_function_.1} parent=27 // pred_check
        %p218 = pneg %p217
      $region30: #{_unnamed_function_.1} parent=27 // pred_check_branch
        %220 = sbr.rel (%p218) target = $region32
      $region31: #{_unnamed_function_.1} parent=27 // pred_region
        %v221 = vlaneseq
        %vm222 = vcmp.ge.s32.totalorder %v221, 0
        %vm223 = vcmp.lt.s32.totalorder %v221, 512
        %vm224 = vmand %vm222, %vm223
        %225 = vst.msk [vmem:[%s216] sm:$0xf] %vm224, 0.0
      $region32: #{_unnamed_function_.1} parent=27 // pred_fallthru
        _
      %v226 = vld [vmem:[%s197] sm:$0x1f]
      %v227 = vld [vmem:[%s197 + $0x8] sm:$0x1f]
      %v228 = vld [vmem:[%s197 + $0x10] sm:$0x1f]
      %v229 = vld [vmem:[%s197 + $0x18] sm:$0x1f]
      %v230 = vld [vmem:[%s208] sm:$0xf]
      %s231 = sadd.s32 %s17, %s18
      %v232 = vlaneseq
      %v233 = vand.u32 %v232, 127
      %v234 = vadd.s32 %v233, 128
      %v235 = vadd.s32 %v233, 256
      %v236 = vadd.s32 %v233, 384
      %s237 = smul.u32 %s231, 512
      %v238 = vstv %s237
      %v239 = vadd.s32 %v233, %v238
      %v240 = vadd.s32 %v234, %v238
      %v241 = vadd.s32 %v235, %v238
      %v242 = vadd.s32 %v236, %v238
      %vm243 = vcmp.lt.s32.totalorder %v239, 512
      %vm244 = vcmp.lt.s32.totalorder %v240, 512
      %vm245 = vcmp.lt.s32.totalorder %v241, 512
      %vm246 = vcmp.lt.s32.totalorder %v242, 512
      %vm247 = vcmask 1044480
      %v248 = vsel %vm247, %v226, -inf
      %v249 = vrot.slane %v248, 4
      %v250 = vmax.f32 %v248, %v249
      %v251 = vrot.slane %v250, 2
      %v252 = vmax.f32 %v250, %v251
      %v253 = vrot.slane %v252, 1
      %v254 = vmax.f32 %v252, %v253
      %v255 = vsel %vm247, %v227, -inf
      %v256 = vrot.slane %v255, 4
      %v257 = vmax.f32 %v255, %v256
      %v258 = vrot.slane %v257, 2
      %v259 = vmax.f32 %v257, %v258
      %v260 = vrot.slane %v259, 1
      %v261 = vmax.f32 %v259, %v260
      %v262 = vsel %vm247, %v228, -inf
      %v263 = vrot.slane %v262, 4
      %v264 = vmax.f32 %v262, %v263
      %v265 = vrot.slane %v264, 2
      %v266 = vmax.f32 %v264, %v265
      %v267 = vrot.slane %v266, 1
      %v268 = vmax.f32 %v266, %v267
      %v269 = vsel %vm247, %v229, -inf
      %v270 = vrot.slane %v269, 4
      %v271 = vmax.f32 %v269, %v270
      %v272 = vrot.slane %v271, 2
      %v273 = vmax.f32 %v271, %v272
      %v274 = vrot.slane %v273, 1
      %v275 = vmax.f32 %v273, %v274
      %v276 = vsub.f32 %v226, %v254
      %v277 = vsub.f32 %v227, %v261
      %v278 = vsub.f32 %v228, %v268
      %v279 = vsub.f32 %v229, %v275
      %v280 = vmul.f32 %v276, 1.442695
      %v281 = vpow.pop %v280
      %v282 = vmul.f32 %v277, 1.442695
      %v283 = vpow.pop %v282
      %v284 = vmul.f32 %v278, 1.442695
      %v285 = vpow.pop %v284
      %v286 = vmul.f32 %v279, 1.442695
      %v287 = vpow.pop %v286
      %v288 = vsel %vm247, %v281, 0.0
      %v289 = vrot.slane %v288, 4
      %v290 = vadd.f32 %v288, %v289
      %v291 = vrot.slane %v290, 2
      %v292 = vadd.f32 %v290, %v291
      %v293 = vrot.slane %v292, 1
      %v294 = vadd.f32 %v292, %v293
      %v295 = vsel %vm247, %v283, 0.0
      %v296 = vrot.slane %v295, 4
      %v297 = vadd.f32 %v295, %v296
      %v298 = vrot.slane %v297, 2
      %v299 = vadd.f32 %v297, %v298
      %v300 = vrot.slane %v299, 1
      %v301 = vadd.f32 %v299, %v300
      %v302 = vsel %vm247, %v285, 0.0
      %v303 = vrot.slane %v302, 4
      %v304 = vadd.f32 %v302, %v303
      %v305 = vrot.slane %v304, 2
      %v306 = vadd.f32 %v304, %v305
      %v307 = vrot.slane %v306, 1
      %v308 = vadd.f32 %v306, %v307
      %v309 = vsel %vm247, %v287, 0.0
      %v310 = vrot.slane %v309, 4
      %v311 = vadd.f32 %v309, %v310
      %v312 = vrot.slane %v311, 2
      %v313 = vadd.f32 %v311, %v312
      %v314 = vrot.slane %v313, 1
      %v315 = vadd.f32 %v313, %v314
      %v316 = vlog2.pop %v294
      %v317 = vmul.f32 %v316, 0.6931472
      %v318 = vlog2.pop %v301
      %v319 = vmul.f32 %v318, 0.6931472
      %v320 = vlog2.pop %v308
      %v321 = vmul.f32 %v320, 0.6931472
      %v322 = vlog2.pop %v315
      %v323 = vmul.f32 %v322, 0.6931472
      %v324 = vadd.f32 %v254, %v317
      %v325 = vadd.f32 %v261, %v319
      %v326 = vadd.f32 %v268, %v321
      %v327 = vadd.f32 %v275, %v323
      %v328 = vlaneseq
      %v329 = vshrl.u32 %v328, 7
      %v330 = vlaneseq
      %v331 = vshrl.u32 %v330, 7
      %v332 = vsub.s32 0, %v331
      %v333 = vrot.slane %v230, %v332
      %v334 = vlaneseq
      %v335 = vshrl.u32 %v334, 7
      %v336 = vsub.s32 1, %v335
      %v337 = vrot.slane %v230, %v336
      %v338 = vlaneseq
      %v339 = vshrl.u32 %v338, 7
      %v340 = vsub.s32 2, %v339
      %v341 = vrot.slane %v230, %v340
      %v342 = vlaneseq
      %v343 = vshrl.u32 %v342, 7
      %v344 = vsub.s32 3, %v343
      %v345 = vrot.slane %v230, %v344
      %vm346 = vcmp.eq.s32.totalorder %v329, %v333
      %vm347 = vcmp.eq.s32.totalorder %v329, %v337
      %vm348 = vcmp.eq.s32.totalorder %v329, %v341
      %vm349 = vcmp.eq.s32.totalorder %v329, %v345
      %v350 = vsel %vm346, %v226, 0.0
      %v351 = vsel %vm347, %v227, 0.0
      %v352 = vsel %vm348, %v228, 0.0
      %v353 = vsel %vm349, %v229, 0.0
      %v354 = vsel %vm247, %v350, 0.0
      %v355 = vrot.slane %v354, 4
      %v356 = vadd.f32 %v354, %v355
      %v357 = vrot.slane %v356, 2
      %v358 = vadd.f32 %v356, %v357
      %v359 = vrot.slane %v358, 1
      %v360 = vadd.f32 %v358, %v359
      %v361 = vsel %vm247, %v351, 0.0
      %v362 = vrot.slane %v361, 4
      %v363 = vadd.f32 %v361, %v362
      %v364 = vrot.slane %v363, 2
      %v365 = vadd.f32 %v363, %v364
      %v366 = vrot.slane %v365, 1
      %v367 = vadd.f32 %v365, %v366
      %v368 = vsel %vm247, %v352, 0.0
      %v369 = vrot.slane %v368, 4
      %v370 = vadd.f32 %v368, %v369
      %v371 = vrot.slane %v370, 2
      %v372 = vadd.f32 %v370, %v371
      %v373 = vrot.slane %v372, 1
      %v374 = vadd.f32 %v372, %v373
      %v375 = vsel %vm247, %v353, 0.0
      %v376 = vrot.slane %v375, 4
      %v377 = vadd.f32 %v375, %v376
      %v378 = vrot.slane %v377, 2
      %v379 = vadd.f32 %v377, %v378
      %v380 = vrot.slane %v379, 1
      %v381 = vadd.f32 %v379, %v380
      %v382 = vld [vmem:[%s216] sm:$0xf]
      %v383 = vsub.f32 %v324, %v360
      %v384 = vsub.f32 %v325, %v367
      %v385 = vsub.f32 %v326, %v374
      %v386 = vsub.f32 %v327, %v381
      %v387 = vsel %vm243, %v383, 0.0
      %v388 = vsel %vm244, %v384, 0.0
      %v389 = vsel %vm245, %v385, 0.0
      %v390 = vsel %vm246, %v386, 0.0
      %v395 = vcombine.low %v387, %v388
      %v396 = vcombine.low %v389, %v390
      %v398 = vunpack.c.l.s4 1966171168
      %v399 = vunpack.c.0.s8 %v398
      %v400 = vlaneseq
      %v401 = vshrl.u32 %v400, 7
      %v402 = vsub.s32 %v399, %v401
      %v403 = vrot.slane %v395, %v402
      %v405 = vunpack.c.l.s4 1966171168
      %v406 = vunpack.c.0.s8 %v405
      %v407 = vlaneseq
      %v408 = vshrl.u32 %v407, 7
      %v409 = vsub.s32 %v406, %v408
      %v410 = vrot.slane %v396, %v409
      %v411 = vcombine.low %v403, %v410
      %v413 = vunpack.c.l.s4 1966171168
      %v414 = vunpack.c.0.s8 %v413
      %v415 = vlaneseq
      %v416 = vshrl.u32 %v415, 7
      %v417 = vsub.s32 %v414, %v416
      %v418 = vrot.slane %v411, %v417
      %v420 = vadd.f32 %v382, %v418
      %v421 = vlaneseq
      %vm422 = vcmp.ge.s32.totalorder %v421, 0
      %vm423 = vcmp.lt.s32.totalorder %v421, 512
      %vm424 = vmand %vm422, %vm423
      %425 = vst.msk [vmem:[%s216] sm:$0xf] %vm424, %v420
      %p426 = scmp.lt.s32.totalorder %s17, 1
      %s427 = scalar_select %p426, %s17, 1
      %s428 = smul.addr %s427, 4
      %s429 = scalar_lea.vmem %s2, %s428
      // Predicated region
      $region33: #{_unnamed_function_.1} parent=27 // pred_check
        %p430 = pneg %p107
      $region34: #{_unnamed_function_.1} parent=27 // pred_check_branch
        %432 = sbr.rel (%p430) target = $region36
      $region35: #{_unnamed_function_.1} parent=27 // pred_region
        _
      $region36: #{_unnamed_function_.1} parent=27 // pred_fallthru
        _
    $region28: #{_unnamed_function_.1} parent=5 // pred_fallthru
      _
    %p433 = scmp.le.s32.totalorder 2, %s8
    // Predicated region
    $region37: #{_unnamed_function_.1} parent=5 // pred_check
      %p434 = pneg %p433
    $region38: #{_unnamed_function_.1} parent=5 // pred_check_branch
      %436 = sbr.rel (%p434) target = $region40
    $region39: #{_unnamed_function_.1} parent=5 // pred_region
      %s437 = ssub.s32 %s8, 2
      // Predicated region
      $region41: #{_unnamed_function_.1} parent=39 // pred_check
        %p438 = pneg %p113
      $region42: #{_unnamed_function_.1} parent=39 // pred_check_branch
        %440 = sbr.rel (%p438) target = $region44
      $region43: #{_unnamed_function_.1} parent=39 // pred_region
        %p441 = scmp.lt.s32.totalorder %s19, 1
        %s442 = scalar_select %p441, %s19, 1
        %s443 = smul.addr %s442, 4
        %s444 = scalar_lea.vmem %s2, %s443
      $region44: #{_unnamed_function_.1} parent=39 // pred_fallthru
        _
    $region40: #{_unnamed_function_.1} parent=5 // pred_fallthru
      _
  $region6: #{_unnamed_function_.1} parent=0 // loop_footer
    %s12 = sadd.s32 1, %s8
  $region7: #{_unnamed_function_.1} parent=0 // loop_footer_branch
    %7 = sbr.rel target = $region3
  $region8: #{_unnamed_function_.1} parent=0 // loop_exit
    _

</llo_original>
